<compile_context>
chip_gen: v5e
topology: v5e:2x2
jax: 0.10.0
libtpu: 0.0.40
codegen_flags: <defaults>
</compile_context>

<pallas_src>
import jax
import jax.numpy as jnp
from jax.experimental import pallas as pl
from jax.experimental.pallas import tpu as pltpu

STATE_DIM = 4            # CartPole-v1 observation_space.shape[0]
K_AUG = STATE_DIM + 1    # + ones row that folds b1 into the layer-1 contraction
HIDDEN_DIM = 256
HC = 64                  # hidden-dim chunk (rows of W1^T per inner step)
LANE_CHUNK = 512         # batch (lane) sub-tile inside one grid block


def _round_up(x, m):
    return ((x + m - 1) // m) * m


def value_critic_kernel(xt_ref, w1_ref, w2_ref, b2_ref, out_ref):
    # xt_ref:  (K_AUG, TB)          bf16  streamed states + ones row (batch on lanes)
    # w1_ref:  (HIDDEN, K_AUG)      bf16  resident [W1^T | b1]
    # w2_ref:  (1, HIDDEN)          bf16  resident W2^T row (lane-dense)
    # b2_ref:  (1, 1)               f32   SMEM scalar
    # out_ref: (1, TB)              f32   lane-dense output slab
    tb = out_ref.shape[-1]
    lbw = LANE_CHUNK if (tb % LANE_CHUNK == 0) else tb   # static at trace time
    w2 = w2_ref[...]                                     # (1, HIDDEN) bf16, tiny
    b2 = b2_ref[0, 0]

    for lb in range(tb // lbw):                          # lane sub-blocks
        x = xt_ref[:, pl.ds(lb * lbw, lbw)]              # (K_AUG, lbw) bf16
        acc = jnp.full((1, lbw), b2, dtype=jnp.float32)  # b2 folded into init
        for c in range(HIDDEN_DIM // HC):                # hidden chunks
            w1c = w1_ref[pl.ds(c * HC, HC), :]           # (HC, K_AUG) bf16
            # layer 1 (bias folded): (HC, K_AUG) @ (K_AUG, lbw) -> (HC, lbw) f32
            h = jnp.dot(w1c, x, preferred_element_type=jnp.float32)
            h = jnp.maximum(h, 0.0).astype(jnp.bfloat16)         # ReLU, bf16 for MXU
            w2c = w2[:, c * HC:(c + 1) * HC]                     # (1, HC) bf16
            # layer 2 partial: (1, HC) @ (HC, lbw) -> (1, lbw) f32, accumulate
            acc = acc + jnp.dot(w2c, h, preferred_element_type=jnp.float32)
        out_ref[:, pl.ds(lb * lbw, lbw)] = acc


def value_critic_forward(state, w1, b1, w2, b2, *, tile_b=4096):
    """state: (B, STATE_DIM) f32; weights in the x @ W + b convention.
    Returns (B, 1) f32, matching nn.Sequential(Linear, ReLU, Linear)."""
    B = state.shape[0]
    TB = min(_round_up(B, 128), _round_up(tile_b, 128))
    B_pad = _round_up(B, TB)

    # Cast to bf16 BEFORE transposing (half the bytes), append the ones row that
    # carries b1, then pad the batch and put it on the lane axis.
    x_bf = state.astype(jnp.bfloat16)                                # (B, 4)
    x_aug = jnp.concatenate([x_bf, jnp.ones((B, 1), jnp.bfloat16)], axis=1)  # (B, 5)
    xt = jnp.pad(x_aug, ((0, B_pad - B), (0, 0))).T                  # (K_AUG, B_pad)

    # [W1^T | b1] as one resident bf16 block; W2^T as a lane-dense bf16 row.
    w1_aug = jnp.concatenate(
        [w1.T, b1.reshape(HIDDEN_DIM, 1)], axis=1).astype(jnp.bfloat16)  # (256, 5)
    w2t = w2.reshape(1, HIDDEN_DIM).astype(jnp.bfloat16)             # (1, 256)
    b2s = b2.reshape(1, 1).astype(jnp.float32)                       # SMEM scalar

    out = pl.pallas_call(
        value_critic_kernel,
        out_shape=jax.ShapeDtypeStruct((1, B_pad), jnp.float32),
        grid=(B_pad // TB,),
        in_specs=[
            pl.BlockSpec((K_AUG, TB), lambda i: (0, i)),             # streamed states
            pl.BlockSpec((HIDDEN_DIM, K_AUG), lambda i: (0, 0)),     # resident [W1^T|b1]
            pl.BlockSpec((1, HIDDEN_DIM), lambda i: (0, 0)),         # resident W2^T
            pl.BlockSpec(memory_space=pltpu.MemorySpace.SMEM),       # b2 scalar
        ],
        out_specs=pl.BlockSpec((1, TB), lambda i: (0, i)),
        compiler_params=pltpu.CompilerParams(
            dimension_semantics=("parallel",)),
    )(xt, w1_aug, w2t, b2s)

    return out[0, :B].reshape(B, 1)


def init_params(key):
    # PyTorch nn.Linear default init: U(-1/sqrt(fan_in), 1/sqrt(fan_in)).
    k1, k2, k3, k4 = jax.random.split(key, 4)
    bound1 = 1.0 / jnp.sqrt(STATE_DIM)
    bound2 = 1.0 / jnp.sqrt(HIDDEN_DIM)
    w1 = jax.random.uniform(k1, (STATE_DIM, HIDDEN_DIM), jnp.float32, -bound1, bound1)
    b1 = jax.random.uniform(k2, (HIDDEN_DIM,), jnp.float32, -bound1, bound1)
    w2 = jax.random.uniform(k3, (HIDDEN_DIM, 1), jnp.float32, -bound2, bound2)
    b2 = jax.random.uniform(k4, (1,), jnp.float32, -bound2, bound2)
    return w1, b1, w2, b2


def reference_forward(state, w1, b1, w2, b2):
    # Mirrors the kernel's dtype path: bf16 state/W1/b1 with f32 accumulation,
    # bf16 hidden activation and bf16 W2 for the second layer (f32 accumulate).
    x = state.astype(jnp.bfloat16).astype(jnp.float32)
    w1f = w1.astype(jnp.bfloat16).astype(jnp.float32)
    b1f = b1.astype(jnp.bfloat16).astype(jnp.float32)
    h = jnp.maximum(
        jnp.dot(x, w1f, precision=jax.lax.Precision.HIGHEST) + b1f, 0.0)
    h = h.astype(jnp.bfloat16).astype(jnp.float32)
    w2f = w2.astype(jnp.bfloat16).astype(jnp.float32)
    return jnp.dot(h, w2f, precision=jax.lax.Precision.HIGHEST) + b2


if __name__ == "__main__":
    key = jax.random.PRNGKey(0)
    pkey, xkey1, xkey2, xkey3 = jax.random.split(key, 4)
    w1, b1, w2, b2 = init_params(pkey)

    # (1) tiny batch: pads to a single 128-wide lane tile, single sub-block.
    B1 = 8
    s1 = jax.random.normal(xkey1, (B1, STATE_DIM), jnp.float32)
    out1 = jax.block_until_ready(value_critic_forward(s1, w1, b1, w2, b2))
    ref1 = reference_forward(s1, w1, b1, w2, b2)
    assert out1.shape == (B1, 1)
    assert jnp.allclose(out1, ref1, atol=2e-3, rtol=2e-3), \
        float(jnp.max(jnp.abs(out1 - ref1)))

    # (2) small tile -> multi-step grid with a padded tail (exercises pipeline).
    B2 = 300
    s2 = jax.random.normal(xkey2, (B2, STATE_DIM), jnp.float32)
    out2 = jax.block_until_ready(
        value_critic_forward(s2, w1, b1, w2, b2, tile_b=128))
    ref2 = reference_forward(s2, w1, b1, w2, b2)
    assert out2.shape == (B2, 1)
    assert jnp.allclose(out2, ref2, atol=2e-3, rtol=2e-3), \
        float(jnp.max(jnp.abs(out2 - ref2)))

    # (3) default tile: exercises the in-kernel lane sub-blocking (TB=1024 -> 2
    #     sub-blocks of 512 lanes) plus the padded batch tail.
    B3 = 1000
    s3 = jax.random.normal(xkey3, (B3, STATE_DIM), jnp.float32)
    out3 = jax.block_until_ready(value_critic_forward(s3, w1, b1, w2, b2))
    ref3 = reference_forward(s3, w1, b1, w2, b2)
    assert out3.shape == (B3, 1)
    assert jnp.allclose(out3, ref3, atol=2e-3, rtol=2e-3), \
        float(jnp.max(jnp.abs(out3 - ref3)))

    print("KERNEL_OK")
</pallas_src>

<mosaic_0001>
module attributes {stable_mosaic.version = 11 : i64} {
  func.func @value_critic_kernel(%arg0: i32, %arg1: memref<5x128xbf16, #tpu.memory_space<vmem>>, %arg2: memref<256x5xbf16, #tpu.memory_space<vmem>>, %arg3: memref<1x256xbf16, #tpu.memory_space<vmem>>, %arg4: memref<1x1xf32, #tpu.memory_space<smem>>, %arg5: memref<1x128xf32, #tpu.memory_space<vmem>>) attributes {dimension_semantics = [#tpu.dimension_semantics<parallel>], iteration_bounds = array<i64: 1>, scalar_prefetch = 0 : i64, scratch_operands = 0 : i64, tpu.core_type = #tpu.core_type<tc>, window_params = [{transform_indices = @transform_0, window_bounds = array<i64: 5, 128>}, {pipeline_mode = #tpu.pipeline_mode<synchronous>, transform_indices = @transform_1, window_bounds = array<i64: 256, 5>}, {pipeline_mode = #tpu.pipeline_mode<synchronous>, transform_indices = @transform_2, window_bounds = array<i64: 1, 256>}, {transform_indices = @transform_3, window_bounds = array<i64: 1, 1>}, {transform_indices = @transform_4, window_bounds = array<i64: 1, 128>}]} {
    %c0 = arith.constant 0 : index
    %c0_0 = arith.constant 0 : index
    %0 = vector.load %arg3[%c0, %c0_0] : memref<1x256xbf16, #tpu.memory_space<vmem>>, vector<1x256xbf16>
    %c0_1 = arith.constant 0 : index
    %c0_2 = arith.constant 0 : index
    %1 = memref.load %arg4[%c0_1, %c0_2] : memref<1x1xf32, #tpu.memory_space<smem>>
    %c0_3 = arith.constant 0 : index
    %c0_4 = arith.constant 0 : index
    %2 = vector.load %arg1[%c0_3, %c0_4] : memref<5x128xbf16, #tpu.memory_space<vmem>>, vector<5x128xbf16>
    %3 = vector.broadcast %1 : f32 to vector<1x128xf32>
    %c0_5 = arith.constant 0 : index
    %c0_6 = arith.constant 0 : index
    %4 = vector.load %arg2[%c0_5, %c0_6] : memref<256x5xbf16, #tpu.memory_space<vmem>>, vector<64x5xbf16>
    %cst = arith.constant dense<0.000000e+00> : vector<64x128xf32>
    %5 = tpu.matmul %4, %2, %cst {dimension_numbers = #tpu.dot_dimension_numbers<[1], [0], [0], [1], [0, 0, 1, 1], [], []>} : vector<64x5xbf16>, vector<5x128xbf16>, vector<64x128xf32> -> vector<64x128xf32>
    %cst_7 = arith.constant 0.000000e+00 : f32
    %6 = vector.broadcast %cst_7 : f32 to vector<64x128xf32>
    %7 = arith.maximumf %5, %6 : vector<64x128xf32>
    %8 = arith.truncf %7 : vector<64x128xf32> to vector<64x128xbf16>
    %9 = vector.extract_strided_slice %0 {offsets = [0, 0], sizes = [1, 64], strides = [1, 1]} : vector<1x256xbf16> to vector<1x64xbf16>
    %cst_8 = arith.constant dense<0.000000e+00> : vector<1x128xf32>
    %10 = tpu.matmul %9, %8, %cst_8 {dimension_numbers = #tpu.dot_dimension_numbers<[1], [0], [0], [1], [0, 0, 1, 1], [], []>} : vector<1x64xbf16>, vector<64x128xbf16>, vector<1x128xf32> -> vector<1x128xf32>
    %11 = arith.addf %3, %10 : vector<1x128xf32>
    %c64 = arith.constant 64 : index
    %c0_9 = arith.constant 0 : index
    %12 = vector.load %arg2[%c64, %c0_9] : memref<256x5xbf16, #tpu.memory_space<vmem>>, vector<64x5xbf16>
    %cst_10 = arith.constant dense<0.000000e+00> : vector<64x128xf32>
    %13 = tpu.matmul %12, %2, %cst_10 {dimension_numbers = #tpu.dot_dimension_numbers<[1], [0], [0], [1], [0, 0, 1, 1], [], []>} : vector<64x5xbf16>, vector<5x128xbf16>, vector<64x128xf32> -> vector<64x128xf32>
    %cst_11 = arith.constant 0.000000e+00 : f32
    %14 = vector.broadcast %cst_11 : f32 to vector<64x128xf32>
    %15 = arith.maximumf %13, %14 : vector<64x128xf32>
    %16 = arith.truncf %15 : vector<64x128xf32> to vector<64x128xbf16>
    %17 = vector.extract_strided_slice %0 {offsets = [0, 64], sizes = [1, 64], strides = [1, 1]} : vector<1x256xbf16> to vector<1x64xbf16>
    %cst_12 = arith.constant dense<0.000000e+00> : vector<1x128xf32>
    %18 = tpu.matmul %17, %16, %cst_12 {dimension_numbers = #tpu.dot_dimension_numbers<[1], [0], [0], [1], [0, 0, 1, 1], [], []>} : vector<1x64xbf16>, vector<64x128xbf16>, vector<1x128xf32> -> vector<1x128xf32>
    %19 = arith.addf %11, %18 : vector<1x128xf32>
    %c128 = arith.constant 128 : index
    %c0_13 = arith.constant 0 : index
    %20 = vector.load %arg2[%c128, %c0_13] : memref<256x5xbf16, #tpu.memory_space<vmem>>, vector<64x5xbf16>
    %cst_14 = arith.constant dense<0.000000e+00> : vector<64x128xf32>
    %21 = tpu.matmul %20, %2, %cst_14 {dimension_numbers = #tpu.dot_dimension_numbers<[1], [0], [0], [1], [0, 0, 1, 1], [], []>} : vector<64x5xbf16>, vector<5x128xbf16>, vector<64x128xf32> -> vector<64x128xf32>
    %cst_15 = arith.constant 0.000000e+00 : f32
    %22 = vector.broadcast %cst_15 : f32 to vector<64x128xf32>
    %23 = arith.maximumf %21, %22 : vector<64x128xf32>
    %24 = arith.truncf %23 : vector<64x128xf32> to vector<64x128xbf16>
    %25 = vector.extract_strided_slice %0 {offsets = [0, 128], sizes = [1, 64], strides = [1, 1]} : vector<1x256xbf16> to vector<1x64xbf16>
    %cst_16 = arith.constant dense<0.000000e+00> : vector<1x128xf32>
    %26 = tpu.matmul %25, %24, %cst_16 {dimension_numbers = #tpu.dot_dimension_numbers<[1], [0], [0], [1], [0, 0, 1, 1], [], []>} : vector<1x64xbf16>, vector<64x128xbf16>, vector<1x128xf32> -> vector<1x128xf32>
    %27 = arith.addf %19, %26 : vector<1x128xf32>
    %c192 = arith.constant 192 : index
    %c0_17 = arith.constant 0 : index
    %28 = vector.load %arg2[%c192, %c0_17] : memref<256x5xbf16, #tpu.memory_space<vmem>>, vector<64x5xbf16>
    %cst_18 = arith.constant dense<0.000000e+00> : vector<64x128xf32>
    %29 = tpu.matmul %28, %2, %cst_18 {dimension_numbers = #tpu.dot_dimension_numbers<[1], [0], [0], [1], [0, 0, 1, 1], [], []>} : vector<64x5xbf16>, vector<5x128xbf16>, vector<64x128xf32> -> vector<64x128xf32>
    %cst_19 = arith.constant 0.000000e+00 : f32
    %30 = vector.broadcast %cst_19 : f32 to vector<64x128xf32>
    %31 = arith.maximumf %29, %30 : vector<64x128xf32>
    %32 = arith.truncf %31 : vector<64x128xf32> to vector<64x128xbf16>
    %33 = vector.extract_strided_slice %0 {offsets = [0, 192], sizes = [1, 64], strides = [1, 1]} : vector<1x256xbf16> to vector<1x64xbf16>
    %cst_20 = arith.constant dense<0.000000e+00> : vector<1x128xf32>
    %34 = tpu.matmul %33, %32, %cst_20 {dimension_numbers = #tpu.dot_dimension_numbers<[1], [0], [0], [1], [0, 0, 1, 1], [], []>} : vector<1x64xbf16>, vector<64x128xbf16>, vector<1x128xf32> -> vector<1x128xf32>
    %35 = arith.addf %27, %34 : vector<1x128xf32>
    %c0_21 = arith.constant 0 : index
    %c0_22 = arith.constant 0 : index
    %36 = vector.load %arg5[%c0_21, %c0_22] : memref<1x128xf32, #tpu.memory_space<vmem>>, vector<1x128xf32>
    tpu.vector_store %arg5[%c0_21, %c0_22], %35 {strides = array<i32>} : memref<1x128xf32, #tpu.memory_space<vmem>>, vector<1x128xf32>,
    return
  }
  func.func @transform_0(%arg0: i32) -> (i32, i32) {
    %c0_i32 = arith.constant 0 : i32
    %c0_i32_0 = arith.constant 0 : i32
    return %c0_i32, %arg0 : i32, i32
  }
  func.func @transform_1(%arg0: i32) -> (i32, i32) {
    %c0_i32 = arith.constant 0 : i32
    %c0_i32_0 = arith.constant 0 : i32
    %c0_i32_1 = arith.constant 0 : i32
    return %c0_i32, %c0_i32_0 : i32, i32
  }
  func.func @transform_2(%arg0: i32) -> (i32, i32) {
    %c0_i32 = arith.constant 0 : i32
    %c0_i32_0 = arith.constant 0 : i32
    %c0_i32_1 = arith.constant 0 : i32
    return %c0_i32, %c0_i32_0 : i32, i32
  }
  func.func @transform_3(%arg0: i32) -> (i32, i32) {
    %c0_i32 = arith.constant 0 : i32
    %c0_i32_0 = arith.constant 0 : i32
    %c0_i32_1 = arith.constant 0 : i32
    return %c0_i32, %c0_i32_0 : i32, i32
  }
  func.func @transform_4(%arg0: i32) -> (i32, i32) {
    %c0_i32 = arith.constant 0 : i32
    %c0_i32_0 = arith.constant 0 : i32
    return %c0_i32, %arg0 : i32, i32
  }
}

</mosaic_0001>

<llo_original>
// kernel: tpu_custom_call.1
$region0: #{tpu_custom_call.1}
  #allocation0 [shape = 'u32[]', space=smem, size = 0x4, offset = 0x4, fixed_abs, tag = 'smem constant byte address 0x4 - core index']
  #allocation1 [shape = 'u32[72,128]{1,0:T(1,128)}', space=vmem, size = 0x9000, scoped, tag = 'internal scratch']
  #allocation2 [shape = 'f32[1,1]{1,0:T(1,128)S(6)}', space=smem, size = 0x200, scoped, tag = 'scoped memory for tpu_custom_call.1']
  %s0 = inlined_call_operand.vmem [shape: bf16[5,128], index: 0, kind: input, shape index: {}]
  %s1 = inlined_call_operand.vmem [shape: bf16[256,5], index: 1, kind: input, shape index: {}]
  %s2 = inlined_call_operand.vmem [shape: bf16[1,256], index: 2, kind: input, shape index: {}]
  %s3 = inlined_call_operand.<no memory space> [shape: f32[1,1], index: 3, kind: input, shape index: {}]
  %s4 = inlined_call_operand.hbm [shape: f32[1,128], index: 4, kind: output, shape index: {}]
  %s5 = sld [smem:[#allocation0]]
  $region26: #{tpu_custom_call.1} parent=0
    _
  %s7 = ssub.s32 1, %s5
  %s8 = scalar_select 0, %s7, %s5
  %9 = sst [smem:[#allocation2]] %s3
  $region1: #{tpu_custom_call.1} parent=0
    #allocation3 [shape = 'u8[512]{0}', space=vmem, size = 0x400, scoped, tag = 'output window, operand 0, single buffered']
    #allocation4 [shape = 's32[1]{0}', space=sflag, size = 0x4, scoped, tag = 'scoped memory for tpu_custom_call.1']
    %10 = vsyncpa [#allocation4], 0
    // Predicated region
    $region2: #{tpu_custom_call.1} parent=1 // pred_check
      _
    $region3: #{tpu_custom_call.1} parent=1 // pred_check_branch
      %12 = sbr.rel (0) target = $region5
    $region4: #{tpu_custom_call.1} parent=1 // pred_region
      _
    $region5: #{tpu_custom_call.1} parent=1 // pred_fallthru
      _
    // Predicated region
    $region6: #{tpu_custom_call.1} parent=1 // pred_check
      _
    $region7: #{tpu_custom_call.1} parent=1 // pred_check_branch
      %14 = sbr.rel (0) target = $region9
    $region8: #{tpu_custom_call.1} parent=1 // pred_region
      _
    $region9: #{tpu_custom_call.1} parent=1 // pred_fallthru
      _
    // Predicated region
    $region10: #{tpu_custom_call.1} parent=1 // pred_check
      _
    $region11: #{tpu_custom_call.1} parent=1 // pred_check_branch
      %16 = sbr.rel (0) target = $region13
    $region12: #{tpu_custom_call.1} parent=1 // pred_region
      _
    $region13: #{tpu_custom_call.1} parent=1 // pred_fallthru
      _
    // Predicated region
    $region14: #{tpu_custom_call.1} parent=1 // pred_check
      _
    $region15: #{tpu_custom_call.1} parent=1 // pred_check_branch
      %18 = sbr.rel (0) target = $region17
    $region16: #{tpu_custom_call.1} parent=1 // pred_region
      _
    $region17: #{tpu_custom_call.1} parent=1 // pred_fallthru
      _
    %v20 = vld [vmem:[%s2] sm:$0x3]
    %s21 = sld [smem:[#allocation2]]
    %v22 = vld [vmem:[%s0] sm:$0x7]
    %v23 = vstv %s21
    %v24 = vld [vmem:[%s1] sm:$0xf]
    %v25 = vld [vmem:[%s1 + $0x4] sm:$0xf]
    %v26 = vld [vmem:[%s1 + $0x8] sm:$0xf]
    %v27 = vld [vmem:[%s1 + $0xc] sm:$0xf]
    %v28 = vld [vmem:[%s1 + $0x10] sm:$0xf]
    %v29 = vld [vmem:[%s1 + $0x14] sm:$0xf]
    %v30 = vld [vmem:[%s1 + $0x18] sm:$0xf]
    %v31 = vld [vmem:[%s1 + $0x1c] sm:$0xf]
    %v40 = vunpack.c.l.b16 %v24
    %v41 = vunpack.c.l.b16 %v25
    %v42 = vunpack.c.l.b16 %v26
    %v43 = vunpack.c.l.b16 %v27
    %v44 = vunpack.c.l.b16 %v28
    %v45 = vunpack.c.l.b16 %v29
    %v46 = vunpack.c.l.b16 %v30
    %v47 = vunpack.c.l.b16 %v31
    %v48 = vpack.c.b16 %v41, %v40
    %v49 = vpack.c.b16 %v43, %v42
    %v50 = vpack.c.b16 %v45, %v44
    %v51 = vpack.c.b16 %v47, %v46
    %vm52 = vcmask 39936
    %v54 = vsel %vm52, %v48, 0
    %v57 = vsel %vm52, %v49, 0
    %v60 = vsel %vm52, %v50, 0
    %v63 = vsel %vm52, %v51, 0
    %vm65 = vcmask 1041408
    %vm66 = vcmask 1042432
    %v67 = vsel %vm65, 4294967295, 65535
    %v68 = vsel %vm66, %v67, 0
    %v70 = vand.u32 %v22, %v68
    %72 = vmatpush.bf16.msra.mxu0 0
    %73 = vmatpush.bf16.msra.mxu0 0
    %74 = vmatpush.bf16.msra.mxu0 0
    %75 = vmatpush.bf16.msra.mxu0 0
    %76 = vmatpush.bf16.msra.mxu0 0
    %77 = vmatpush.bf16.msra.mxu0 0
    %78 = vmatpush.bf16.msra.mxu0 0
    %79 = vmatpush.bf16.msra.mxu0 %v70
    %80 = vmatmul.bf16.gmra.mxu0 %v54
    %v81 = vpop.f32.mrf.mxu0
    %v82 = vadd.f32 0.0, %v81
    %v83 = vpop.f32.mrf.mxu0
    %v84 = vadd.f32 0.0, %v83
    %85 = vmatmul.bf16.gmra.mxu0 %v57
    %v86 = vpop.f32.mrf.mxu0
    %v87 = vadd.f32 0.0, %v86
    %v88 = vpop.f32.mrf.mxu0
    %v89 = vadd.f32 0.0, %v88
    %90 = vmatmul.bf16.gmra.mxu0 %v60
    %v91 = vpop.f32.mrf.mxu0
    %v92 = vadd.f32 0.0, %v91
    %v93 = vpop.f32.mrf.mxu0
    %v94 = vadd.f32 0.0, %v93
    %95 = vmatmul.bf16.gmra.mxu0 %v63
    %v96 = vpop.f32.mrf.mxu0
    %v97 = vadd.f32 0.0, %v96
    %v98 = vpop.f32.mrf.mxu0
    %v99 = vadd.f32 0.0, %v98
    %100 = vdwg.mxu0
    %v101 = vmax.f32 %v82, 0.0
    %v102 = vmax.f32 %v84, 0.0
    %v103 = vmax.f32 %v87, 0.0
    %v104 = vmax.f32 %v89, 0.0
    %v105 = vmax.f32 %v92, 0.0
    %v106 = vmax.f32 %v94, 0.0
    %v107 = vmax.f32 %v97, 0.0
    %v108 = vmax.f32 %v99, 0.0
    %v109 = vpack.c.bf16 %v102, %v101
    %v110 = vpack.c.bf16 %v104, %v103
    %v111 = vpack.c.bf16 %v106, %v105
    %v112 = vpack.c.bf16 %v108, %v107
    %vm113 = vcmask 523264
    %v115 = vsel %vm113, %v20, 0
    %117 = vmatpush.bf16.msra.mxu0 0
    %118 = vmatpush.bf16.msra.mxu0 0
    %119 = vmatpush.bf16.msra.mxu0 0
    %120 = vmatpush.bf16.msra.mxu0 0
    %121 = vmatpush.bf16.msra.mxu0 %v112
    %122 = vmatpush.bf16.msra.mxu0 %v111
    %123 = vmatpush.bf16.msra.mxu0 %v110
    %124 = vmatpush.bf16.msra.mxu0 %v109
    %125 = vmatmul.bf16.gmra.mxu0 %v115
    %v126 = vpop.f32.mrf.mxu0
    %v127 = vadd.f32 0.0, %v126
    %v128 = vpop.f32.mrf.mxu0
    %129 = vdwg.mxu0
    %v130 = vadd.f32 %v23, %v127
    %v131 = vld [vmem:[%s1 + $0x20] sm:$0xf]
    %v132 = vld [vmem:[%s1 + $0x24] sm:$0xf]
    %v133 = vld [vmem:[%s1 + $0x28] sm:$0xf]
    %v134 = vld [vmem:[%s1 + $0x2c] sm:$0xf]
    %v135 = vld [vmem:[%s1 + $0x30] sm:$0xf]
    %v136 = vld [vmem:[%s1 + $0x34] sm:$0xf]
    %v137 = vld [vmem:[%s1 + $0x38] sm:$0xf]
    %v138 = vld [vmem:[%s1 + $0x3c] sm:$0xf]
    %v147 = vunpack.c.l.b16 %v131
    %v148 = vunpack.c.l.b16 %v132
    %v149 = vunpack.c.l.b16 %v133
    %v150 = vunpack.c.l.b16 %v134
    %v151 = vunpack.c.l.b16 %v135
    %v152 = vunpack.c.l.b16 %v136
    %v153 = vunpack.c.l.b16 %v137
    %v154 = vunpack.c.l.b16 %v138
    %v155 = vpack.c.b16 %v148, %v147
    %v156 = vpack.c.b16 %v150, %v149
    %v157 = vpack.c.b16 %v152, %v151
    %v158 = vpack.c.b16 %v154, %v153
    %v160 = vsel %vm52, %v155, 0
    %v163 = vsel %vm52, %v156, 0
    %v166 = vsel %vm52, %v157, 0
    %v169 = vsel %vm52, %v158, 0
    %171 = vmatpush.bf16.msra.mxu0 0
    %172 = vmatpush.bf16.msra.mxu0 0
    %173 = vmatpush.bf16.msra.mxu0 0
    %174 = vmatpush.bf16.msra.mxu0 0
    %175 = vmatpush.bf16.msra.mxu0 0
    %176 = vmatpush.bf16.msra.mxu0 0
    %177 = vmatpush.bf16.msra.mxu0 0
    %178 = vmatpush.bf16.msra.mxu0 %v70
    %179 = vmatmul.bf16.gmra.mxu0 %v160
    %v180 = vpop.f32.mrf.mxu0
    %v181 = vadd.f32 0.0, %v180
    %v182 = vpop.f32.mrf.mxu0
    %v183 = vadd.f32 0.0, %v182
    %184 = vmatmul.bf16.gmra.mxu0 %v163
    %v185 = vpop.f32.mrf.mxu0
    %v186 = vadd.f32 0.0, %v185
    %v187 = vpop.f32.mrf.mxu0
    %v188 = vadd.f32 0.0, %v187
    %189 = vmatmul.bf16.gmra.mxu0 %v166
    %v190 = vpop.f32.mrf.mxu0
    %v191 = vadd.f32 0.0, %v190
    %v192 = vpop.f32.mrf.mxu0
    %v193 = vadd.f32 0.0, %v192
    %194 = vmatmul.bf16.gmra.mxu0 %v169
    %v195 = vpop.f32.mrf.mxu0
    %v196 = vadd.f32 0.0, %v195
    %v197 = vpop.f32.mrf.mxu0
    %v198 = vadd.f32 0.0, %v197
    %199 = vdwg.mxu0
    %v200 = vmax.f32 %v181, 0.0
    %v201 = vmax.f32 %v183, 0.0
    %v202 = vmax.f32 %v186, 0.0
    %v203 = vmax.f32 %v188, 0.0
    %v204 = vmax.f32 %v191, 0.0
    %v205 = vmax.f32 %v193, 0.0
    %v206 = vmax.f32 %v196, 0.0
    %v207 = vmax.f32 %v198, 0.0
    %v208 = vpack.c.bf16 %v201, %v200
    %v209 = vpack.c.bf16 %v203, %v202
    %v210 = vpack.c.bf16 %v205, %v204
    %v211 = vpack.c.bf16 %v207, %v206
    %212 = vst [vmem:[#allocation1] ss:$9 sm:$0xff] %v20
    %v213 = vld [vmem:[#allocation1] sm:$0xff]
    %215 = vrot.lane.b32.xlu0 %v213, 64
    %v216 = vpop.permute.xlu0 %215
    %v218 = vsel %vm113, %v216, 0
    %220 = vmatpush.bf16.msra.mxu0 0
    %221 = vmatpush.bf16.msra.mxu0 0
    %222 = vmatpush.bf16.msra.mxu0 0
    %223 = vmatpush.bf16.msra.mxu0 0
    %224 = vmatpush.bf16.msra.mxu0 %v211
    %225 = vmatpush.bf16.msra.mxu0 %v210
    %226 = vmatpush.bf16.msra.mxu0 %v209
    %227 = vmatpush.bf16.msra.mxu0 %v208
    %228 = vmatmul.bf16.gmra.mxu0 %v218
    %v229 = vpop.f32.mrf.mxu0
    %v230 = vadd.f32 0.0, %v229
    %v231 = vpop.f32.mrf.mxu0
    %232 = vdwg.mxu0
    %v233 = vadd.f32 %v130, %v230
    %v234 = vld [vmem:[%s1 + $0x40] sm:$0xf]
    %v235 = vld [vmem:[%s1 + $0x44] sm:$0xf]
    %v236 = vld [vmem:[%s1 + $0x48] sm:$0xf]
    %v237 = vld [vmem:[%s1 + $0x4c] sm:$0xf]
    %v238 = vld [vmem:[%s1 + $0x50] sm:$0xf]
    %v239 = vld [vmem:[%s1 + $0x54] sm:$0xf]
    %v240 = vld [vmem:[%s1 + $0x58] sm:$0xf]
    %v241 = vld [vmem:[%s1 + $0x5c] sm:$0xf]
    %v250 = vunpack.c.l.b16 %v234
    %v251 = vunpack.c.l.b16 %v235
    %v252 = vunpack.c.l.b16 %v236
    %v253 = vunpack.c.l.b16 %v237
    %v254 = vunpack.c.l.b16 %v238
    %v255 = vunpack.c.l.b16 %v239
    %v256 = vunpack.c.l.b16 %v240
    %v257 = vunpack.c.l.b16 %v241
    %v258 = vpack.c.b16 %v251, %v250
    %v259 = vpack.c.b16 %v253, %v252
    %v260 = vpack.c.b16 %v255, %v254
    %v261 = vpack.c.b16 %v257, %v256
    %v263 = vsel %vm52, %v258, 0
    %v266 = vsel %vm52, %v259, 0
    %v269 = vsel %vm52, %v260, 0
    %v272 = vsel %vm52, %v261, 0
    %274 = vmatpush.bf16.msra.mxu0 0
    %275 = vmatpush.bf16.msra.mxu0 0
    %276 = vmatpush.bf16.msra.mxu0 0
    %277 = vmatpush.bf16.msra.mxu0 0
    %278 = vmatpush.bf16.msra.mxu0 0
    %279 = vmatpush.bf16.msra.mxu0 0
    %280 = vmatpush.bf16.msra.mxu0 0
    %281 = vmatpush.bf16.msra.mxu0 %v70
    %282 = vmatmul.bf16.gmra.mxu0 %v263
    %v283 = vpop.f32.mrf.mxu0
    %v284 = vadd.f32 0.0, %v283
    %v285 = vpop.f32.mrf.mxu0
    %v286 = vadd.f32 0.0, %v285
    %287 = vmatmul.bf16.gmra.mxu0 %v266
    %v288 = vpop.f32.mrf.mxu0
    %v289 = vadd.f32 0.0, %v288
    %v290 = vpop.f32.mrf.mxu0
    %v291 = vadd.f32 0.0, %v290
    %292 = vmatmul.bf16.gmra.mxu0 %v269
    %v293 = vpop.f32.mrf.mxu0
    %v294 = vadd.f32 0.0, %v293
    %v295 = vpop.f32.mrf.mxu0
    %v296 = vadd.f32 0.0, %v295
    %297 = vmatmul.bf16.gmra.mxu0 %v272
    %v298 = vpop.f32.mrf.mxu0
    %v299 = vadd.f32 0.0, %v298
    %v300 = vpop.f32.mrf.mxu0
    %v301 = vadd.f32 0.0, %v300
    %302 = vdwg.mxu0
    %v303 = vmax.f32 %v284, 0.0
    %v304 = vmax.f32 %v286, 0.0
    %v305 = vmax.f32 %v289, 0.0
    %v306 = vmax.f32 %v291, 0.0
    %v307 = vmax.f32 %v294, 0.0
    %v308 = vmax.f32 %v296, 0.0
    %v309 = vmax.f32 %v299, 0.0
    %v310 = vmax.f32 %v301, 0.0
    %v311 = vpack.c.bf16 %v304, %v303
    %v312 = vpack.c.bf16 %v306, %v305
    %v313 = vpack.c.bf16 %v308, %v307
    %v314 = vpack.c.bf16 %v310, %v309
    %315 = vst [vmem:[#allocation1] ss:$9 sm:$0xff] %v20
    %v316 = vld [vmem:[#allocation1 + $0x9] sm:$0xff]
    %v317 = vsel %vm113, %v316, 0
    %319 = vmatpush.bf16.msra.mxu0 0
    %320 = vmatpush.bf16.msra.mxu0 0
    %321 = vmatpush.bf16.msra.mxu0 0
    %322 = vmatpush.bf16.msra.mxu0 0
    %323 = vmatpush.bf16.msra.mxu0 %v314
    %324 = vmatpush.bf16.msra.mxu0 %v313
    %325 = vmatpush.bf16.msra.mxu0 %v312
    %326 = vmatpush.bf16.msra.mxu0 %v311
    %327 = vmatmul.bf16.gmra.mxu0 %v317
    %v328 = vpop.f32.mrf.mxu0
    %v329 = vadd.f32 0.0, %v328
    %v330 = vpop.f32.mrf.mxu0
    %331 = vdwg.mxu0
    %v332 = vadd.f32 %v233, %v329
    %v333 = vld [vmem:[%s1 + $0x60] sm:$0xf]
    %v334 = vld [vmem:[%s1 + $0x64] sm:$0xf]
    %v335 = vld [vmem:[%s1 + $0x68] sm:$0xf]
    %v336 = vld [vmem:[%s1 + $0x6c] sm:$0xf]
    %v337 = vld [vmem:[%s1 + $0x70] sm:$0xf]
    %v338 = vld [vmem:[%s1 + $0x74] sm:$0xf]
    %v339 = vld [vmem:[%s1 + $0x78] sm:$0xf]
    %v340 = vld [vmem:[%s1 + $0x7c] sm:$0xf]
    %v349 = vunpack.c.l.b16 %v333
    %v350 = vunpack.c.l.b16 %v334
    %v351 = vunpack.c.l.b16 %v335
    %v352 = vunpack.c.l.b16 %v336
    %v353 = vunpack.c.l.b16 %v337
    %v354 = vunpack.c.l.b16 %v338
    %v355 = vunpack.c.l.b16 %v339
    %v356 = vunpack.c.l.b16 %v340
    %v357 = vpack.c.b16 %v350, %v349
    %v358 = vpack.c.b16 %v352, %v351
    %v359 = vpack.c.b16 %v354, %v353
    %v360 = vpack.c.b16 %v356, %v355
    %v362 = vsel %vm52, %v357, 0
    %v365 = vsel %vm52, %v358, 0
    %v368 = vsel %vm52, %v359, 0
    %v371 = vsel %vm52, %v360, 0
    %373 = vmatpush.bf16.msra.mxu0 0
    %374 = vmatpush.bf16.msra.mxu0 0
    %375 = vmatpush.bf16.msra.mxu0 0
    %376 = vmatpush.bf16.msra.mxu0 0
    %377 = vmatpush.bf16.msra.mxu0 0
    %378 = vmatpush.bf16.msra.mxu0 0
    %379 = vmatpush.bf16.msra.mxu0 0
    %380 = vmatpush.bf16.msra.mxu0 %v70
    %381 = vmatmul.bf16.gmra.mxu0 %v362
    %v382 = vpop.f32.mrf.mxu0
    %v383 = vadd.f32 0.0, %v382
    %v384 = vpop.f32.mrf.mxu0
    %v385 = vadd.f32 0.0, %v384
    %386 = vmatmul.bf16.gmra.mxu0 %v365
    %v387 = vpop.f32.mrf.mxu0
    %v388 = vadd.f32 0.0, %v387
    %v389 = vpop.f32.mrf.mxu0
    %v390 = vadd.f32 0.0, %v389
    %391 = vmatmul.bf16.gmra.mxu0 %v368
    %v392 = vpop.f32.mrf.mxu0
    %v393 = vadd.f32 0.0, %v392
    %v394 = vpop.f32.mrf.mxu0
    %v395 = vadd.f32 0.0, %v394
    %396 = vmatmul.bf16.gmra.mxu0 %v371
    %v397 = vpop.f32.mrf.mxu0
    %v398 = vadd.f32 0.0, %v397
    %v399 = vpop.f32.mrf.mxu0
    %v400 = vadd.f32 0.0, %v399
    %401 = vdwg.mxu0
    %v402 = vmax.f32 %v383, 0.0
    %v403 = vmax.f32 %v385, 0.0
    %v404 = vmax.f32 %v388, 0.0
    %v405 = vmax.f32 %v390, 0.0
    %v406 = vmax.f32 %v393, 0.0
    %v407 = vmax.f32 %v395, 0.0
    %v408 = vmax.f32 %v398, 0.0
    %v409 = vmax.f32 %v400, 0.0
    %v410 = vpack.c.bf16 %v403, %v402
    %v411 = vpack.c.bf16 %v405, %v404
    %v412 = vpack.c.bf16 %v407, %v406
    %v413 = vpack.c.bf16 %v409, %v408
    %414 = vst [vmem:[#allocation1] ss:$9 sm:$0xff] %v20
    %v415 = vld [vmem:[#allocation1 + $0x9] sm:$0xff]
    %417 = vrot.lane.b32.xlu0 %v415, 64
    %v418 = vpop.permute.xlu0 %417
    %v420 = vsel %vm113, %v418, 0
    %422 = vmatpush.bf16.msra.mxu0 0
    %423 = vmatpush.bf16.msra.mxu0 0
    %424 = vmatpush.bf16.msra.mxu0 0
    %425 = vmatpush.bf16.msra.mxu0 0
    %426 = vmatpush.bf16.msra.mxu0 %v413
    %427 = vmatpush.bf16.msra.mxu0 %v412
    %428 = vmatpush.bf16.msra.mxu0 %v411
    %429 = vmatpush.bf16.msra.mxu0 %v410
    %430 = vmatmul.bf16.gmra.mxu0 %v420
    %v431 = vpop.f32.mrf.mxu0
    %v432 = vadd.f32 0.0, %v431
    %v433 = vpop.f32.mrf.mxu0
    %434 = vdwg.mxu0
    %v435 = vadd.f32 %v332, %v432
    %436 = vst [vmem:[#allocation3] sm:$0x1] %v435
    // Predicated region
    $region18: #{tpu_custom_call.1} parent=1 // pred_check
      _
    $region19: #{tpu_custom_call.1} parent=1 // pred_check_branch
      %438 = sbr.rel (0) target = $region21
    $region20: #{tpu_custom_call.1} parent=1 // pred_region
      %440 = vsyncadd [#allocation4], 0
      %s442 = sshll.u32 [#allocation3], 4
      %s443 = int_to_ptr.vmem [resolvable:$true] %s442
      %s444 = sshll.u32 %s4, 4
      %s445 = int_to_ptr.hbm [resolvable:$true] %s444
      %447 = dma.vmem_to_hbm [thread:$0]  %s443, 16, %s445, [#allocation4]
    $region21: #{tpu_custom_call.1} parent=1 // pred_fallthru
      _
    // Predicated region
    $region22: #{tpu_custom_call.1} parent=1 // pred_check
      _
    $region23: #{tpu_custom_call.1} parent=1 // pred_check_branch
      %449 = sbr.rel (0) target = $region25
    $region24: #{tpu_custom_call.1} parent=1 // pred_region
      %451 = dma.done [#allocation4], 16
    $region25: #{tpu_custom_call.1} parent=1 // pred_fallthru
      _
    %452 = vsyncpa [#allocation4], 1

</llo_original>
